<compile_context>
chip_gen: v5e
topology: v5e:2x2
jax: 0.10.0
libtpu: 0.0.40
codegen_flags: <defaults>
</compile_context>

<pallas_src>
import jax
import jax.numpy as jnp
from jax.experimental import pallas as pl
from jax.experimental.pallas import tpu as pltpu

# --- reproduce the module's vocabulary-derived sizes ------------------------
m = 3
sentences = ['jack like dog', 'jack like cat', 'jack like animal',
             'dog cat animal', 'banana apple cat dog like',
             'dog fish milk like', 'dog cat animal like', 'jack like apple',
             'apple like', 'jack like banana',
             'apple banana jack movie book music like', 'cat dog hate',
             'cat dog like']
sentences_list = ' '.join(sentences).split()
# sorted() for determinism (Python set order is not deterministic across runs)
vocab = sorted(set(sentences_list))
vocab_size = len(vocab)          # 13

LANE = 128
V_PAD = ((vocab_size + LANE - 1) // LANE) * LANE   # 128 (lane-dense everywhere)


# --- Pallas kernel -----------------------------------------------------------
def word2vec_kernel(x_ref, wt_ref, vp_ref, o_ref):
    # x  : (batch, V_PAD)  dense context rows, zero in lanes >= vocab_size
    # wt : (m, V_PAD)      W transposed + zero-padded (row k broadcasts vs x)
    # vp : (m, V_PAD)      V zero-padded to lane-dense width
    # o  : (batch, V_PAD)  lane-dense logits; lanes >= vocab_size are exactly 0
    #
    # All work is VPU (elementwise) + XLU (lane reduce); no MXU. m == 3 is
    # unrolled at trace time.
    x = x_ref[...]

    # k = 0 term initializes the accumulator (no broadcast-zero + add).
    h0 = jnp.sum(x * wt_ref[0:1, :], axis=-1, keepdims=True)   # (batch, 1)
    acc = h0 * vp_ref[0:1, :]                                  # (batch, V_PAD)
    for k in range(1, m):
        h_k = jnp.sum(x * wt_ref[k:k + 1, :], axis=-1, keepdims=True)
        acc = acc + h_k * vp_ref[k:k + 1, :]

    o_ref[...] = acc


def _word2vec_pallas(x_pad, wt_pad, vp_pad):
    """Lane-dense forward: (batch, V_PAD) x (m, V_PAD) x (m, V_PAD) -> (batch, V_PAD)."""
    batch = x_pad.shape[0]
    return pl.pallas_call(
        word2vec_kernel,
        out_shape=jax.ShapeDtypeStruct((batch, V_PAD), jnp.float32),
        in_specs=[
            pl.BlockSpec(memory_space=pltpu.MemorySpace.VMEM),
            pl.BlockSpec(memory_space=pltpu.MemorySpace.VMEM),
            pl.BlockSpec(memory_space=pltpu.MemorySpace.VMEM),
        ],
        out_specs=pl.BlockSpec(memory_space=pltpu.MemorySpace.VMEM),
    )(x_pad, wt_pad, vp_pad)


# Hot path: everything is already lane-dense; exactly one custom call per step.
word2vec_forward_padded = jax.jit(_word2vec_pallas)


def prepare_params(w, v):
    """One-time parameter layout prep (outside the per-step path).

    w: (vocab_size, m), v: (m, vocab_size)  ->  wt_pad, vp_pad: (m, V_PAD)
    """
    wt_pad = jnp.zeros((m, V_PAD), jnp.float32).at[:, :vocab_size].set(w.T)
    vp_pad = jnp.zeros((m, V_PAD), jnp.float32).at[:, :vocab_size].set(v)
    return wt_pad, vp_pad


@jax.jit
def word2vec_forward(x, w, v):
    """General fallback matching torch.mm(X, W) @ V exactly.

    Accepts the module's native shapes: x (batch, vocab_size), w (vocab_size, m),
    v (m, vocab_size); returns (batch, vocab_size). Pays pad/slice plumbing —
    prefer prepare_params + word2vec_forward_padded on the training hot path.
    """
    x_pad = jnp.zeros((x.shape[0], V_PAD), jnp.float32).at[:, :vocab_size].set(x)
    wt_pad, vp_pad = prepare_params(w, v)
    out = _word2vec_pallas(x_pad, wt_pad, vp_pad)
    return out[:, :vocab_size]


if __name__ == "__main__":
    key = jax.random.PRNGKey(0)
    kw, kv, kx = jax.random.split(key, 3)

    # Parameters: same shapes as nn.Parameter(torch.randn(...)) in __init__.
    W = jax.random.normal(kw, (vocab_size, m), dtype=jnp.float32)
    V = jax.random.normal(kv, (m, vocab_size), dtype=jnp.float32)

    # One-time layout prep (constant across training steps).
    Wt_pad, Vp_pad = prepare_params(W, V)
    Wt_pad, Vp_pad = jax.block_until_ready((Wt_pad, Vp_pad))

    # Input: a small batch of one-hot context vectors (as the CBOW training
    # loop feeds this module), built lane-dense directly (no runtime pad).
    batch = 8
    idx = jax.random.randint(kx, (batch,), 0, vocab_size)
    X_pad = jax.nn.one_hot(idx, V_PAD, dtype=jnp.float32)      # (batch, 128)
    X = X_pad[:, :vocab_size]                                  # module-native view

    # Hot path: single pallas_call, lane-dense in and out.
    out_pad = word2vec_forward_padded(X_pad, Wt_pad, Vp_pad)
    out_pad = jax.block_until_ready(out_pad)
    # NOTE: lanes 13..127 of out_pad are exactly 0 (V is zero-padded). Any
    # downstream softmax over the padded output must slice or mask them.
    out = out_pad[:, :vocab_size]

    # General (module-contract) entrypoint, exercised once as well.
    out_general = jax.block_until_ready(word2vec_forward(X, W, V))

    # Reference check in plain JAX.
    ref = X @ W @ V
    assert out.shape == (batch, vocab_size)
    assert jnp.allclose(out, ref, atol=1e-5, rtol=1e-5)
    assert jnp.allclose(out_general, ref, atol=1e-5, rtol=1e-5)
    assert jnp.allclose(out_pad[:, vocab_size:], 0.0)

    print("KERNEL_OK")
</pallas_src>

<mosaic_0001>
module attributes {stable_mosaic.version = 11 : i64} {
  func.func @word2vec_kernel(%arg0: memref<8x128xf32, #tpu.memory_space<vmem>>, %arg1: memref<3x128xf32, #tpu.memory_space<vmem>>, %arg2: memref<3x128xf32, #tpu.memory_space<vmem>>, %arg3: memref<8x128xf32, #tpu.memory_space<vmem>>) attributes {dimension_semantics = [], scalar_prefetch = 0 : i64, scratch_operands = 0 : i64, tpu.core_type = #tpu.core_type<tc>} {
    %c0 = arith.constant 0 : index
    %c0_0 = arith.constant 0 : index
    %0 = vector.load %arg0[%c0, %c0_0] : memref<8x128xf32, #tpu.memory_space<vmem>>, vector<8x128xf32>
    %c0_1 = arith.constant 0 : index
    %c0_2 = arith.constant 0 : index
    %1 = vector.load %arg1[%c0_1, %c0_2] : memref<3x128xf32, #tpu.memory_space<vmem>>, vector<1x128xf32>
    %2 = vector.broadcast %1 : vector<1x128xf32> to vector<8x128xf32>
    %3 = arith.mulf %0, %2 : vector<8x128xf32>
    %cst = arith.constant dense<0.000000e+00> : vector<8xf32>
    %4 = vector.multi_reduction <add>, %3, %cst [1] : vector<8x128xf32> to vector<8xf32>
    %5 = vector.shape_cast %4 : vector<8xf32> to vector<8x1xf32>
    %c0_3 = arith.constant 0 : index
    %c0_4 = arith.constant 0 : index
    %6 = vector.load %arg2[%c0_3, %c0_4] : memref<3x128xf32, #tpu.memory_space<vmem>>, vector<1x128xf32>
    %7 = vector.broadcast %5 : vector<8x1xf32> to vector<8x128xf32>
    %8 = vector.broadcast %6 : vector<1x128xf32> to vector<8x128xf32>
    %9 = arith.mulf %7, %8 : vector<8x128xf32>
    %c1 = arith.constant 1 : index
    %c0_5 = arith.constant 0 : index
    %10 = vector.load %arg1[%c1, %c0_5] : memref<3x128xf32, #tpu.memory_space<vmem>>, vector<1x128xf32>
    %11 = vector.broadcast %10 : vector<1x128xf32> to vector<8x128xf32>
    %12 = arith.mulf %0, %11 : vector<8x128xf32>
    %cst_6 = arith.constant dense<0.000000e+00> : vector<8xf32>
    %13 = vector.multi_reduction <add>, %12, %cst_6 [1] : vector<8x128xf32> to vector<8xf32>
    %14 = vector.shape_cast %13 : vector<8xf32> to vector<8x1xf32>
    %c1_7 = arith.constant 1 : index
    %c0_8 = arith.constant 0 : index
    %15 = vector.load %arg2[%c1_7, %c0_8] : memref<3x128xf32, #tpu.memory_space<vmem>>, vector<1x128xf32>
    %16 = vector.broadcast %14 : vector<8x1xf32> to vector<8x128xf32>
    %17 = vector.broadcast %15 : vector<1x128xf32> to vector<8x128xf32>
    %18 = arith.mulf %16, %17 : vector<8x128xf32>
    %19 = arith.addf %9, %18 : vector<8x128xf32>
    %c2 = arith.constant 2 : index
    %c0_9 = arith.constant 0 : index
    %20 = vector.load %arg1[%c2, %c0_9] : memref<3x128xf32, #tpu.memory_space<vmem>>, vector<1x128xf32>
    %21 = vector.broadcast %20 : vector<1x128xf32> to vector<8x128xf32>
    %22 = arith.mulf %0, %21 : vector<8x128xf32>
    %cst_10 = arith.constant dense<0.000000e+00> : vector<8xf32>
    %23 = vector.multi_reduction <add>, %22, %cst_10 [1] : vector<8x128xf32> to vector<8xf32>
    %24 = vector.shape_cast %23 : vector<8xf32> to vector<8x1xf32>
    %c2_11 = arith.constant 2 : index
    %c0_12 = arith.constant 0 : index
    %25 = vector.load %arg2[%c2_11, %c0_12] : memref<3x128xf32, #tpu.memory_space<vmem>>, vector<1x128xf32>
    %26 = vector.broadcast %24 : vector<8x1xf32> to vector<8x128xf32>
    %27 = vector.broadcast %25 : vector<1x128xf32> to vector<8x128xf32>
    %28 = arith.mulf %26, %27 : vector<8x128xf32>
    %29 = arith.addf %19, %28 : vector<8x128xf32>
    %c0_13 = arith.constant 0 : index
    %c0_14 = arith.constant 0 : index
    %30 = vector.load %arg3[%c0_13, %c0_14] : memref<8x128xf32, #tpu.memory_space<vmem>>, vector<8x128xf32>
    tpu.vector_store %arg3[%c0_13, %c0_14], %29 {strides = array<i32>} : memref<8x128xf32, #tpu.memory_space<vmem>>, vector<8x128xf32>,
    return
  }
}

</mosaic_0001>

<llo_original>
// kernel: _word2vec_pallas.1
$region0: #{_word2vec_pallas.1}
  #allocation0 [shape = 'u32[]', space=smem, size = 0x4, offset = 0x4, fixed_abs, tag = 'smem constant byte address 0x4 - core index']
  #allocation1 [shape = 'u32[72,128]{1,0:T(1,128)}', space=vmem, size = 0x9000, scoped, tag = 'internal scratch']
  %s0 = inlined_call_operand.hbm [shape: f32[8,128], index: 0, kind: input, shape index: {}]
  %s1 = inlined_call_operand.hbm [shape: f32[3,128], index: 1, kind: input, shape index: {}]
  %s2 = inlined_call_operand.hbm [shape: f32[3,128], index: 2, kind: input, shape index: {}]
  %s3 = inlined_call_operand.hbm [shape: f32[8,128], index: 3, kind: output, shape index: {}]
  %s4 = sld [smem:[#allocation0]]
  $region34: #{_word2vec_pallas.1} parent=0
    _
  %s6 = ssub.s32 1, %s4
  %s7 = scalar_select 0, %s6, %s4
  $region1: #{_word2vec_pallas.1} parent=0
    #allocation2 [shape = 'u8[4096]{0}', space=vmem, size = 0x1000, scoped, tag = 'input window, operand 0, single buffered']
    #allocation3 [shape = 's32[1]{0}', space=sflag, size = 0x4, scoped, tag = 'scoped memory for _word2vec_pallas.1']
    #allocation4 [shape = 's32[1]{0}', space=sflag, size = 0x4, scoped, tag = 'scoped memory for _word2vec_pallas.1']
    #allocation5 [shape = 'u8[2048]{0}', space=vmem, size = 0x800, scoped, tag = 'input window, operand 1, single buffered']
    #allocation6 [shape = 's32[1]{0}', space=sflag, size = 0x4, scoped, tag = 'scoped memory for _word2vec_pallas.1']
    #allocation7 [shape = 'u8[2048]{0}', space=vmem, size = 0x800, scoped, tag = 'input window, operand 2, single buffered']
    #allocation8 [shape = 'u8[4096]{0}', space=vmem, size = 0x1000, scoped, tag = 'output window, operand 0, single buffered']
    %8 = vsyncpa [#allocation3], 0
    %9 = vsyncpa [#allocation6], 0
    %10 = vsyncpa [#allocation4], 0
    // Predicated region
    $region2: #{_word2vec_pallas.1} parent=1 // pred_check
      _
    $region3: #{_word2vec_pallas.1} parent=1 // pred_check_branch
      %12 = sbr.rel (0) target = $region5
    $region4: #{_word2vec_pallas.1} parent=1 // pred_region
      %14 = vsyncadd [#allocation3], 0
      %s16 = sshll.u32 %s0, 4
      %s17 = int_to_ptr.hbm [resolvable:$true] %s16
      %s18 = sshll.u32 [#allocation2], 4
      %s19 = int_to_ptr.vmem [resolvable:$true] %s18
      %21 = dma.hbm_to_vmem [thread:$0]  %s17, 128, %s19, [#allocation3]
    $region5: #{_word2vec_pallas.1} parent=1 // pred_fallthru
      _
    // Predicated region
    $region6: #{_word2vec_pallas.1} parent=1 // pred_check
      _
    $region7: #{_word2vec_pallas.1} parent=1 // pred_check_branch
      %23 = sbr.rel (0) target = $region9
    $region8: #{_word2vec_pallas.1} parent=1 // pred_region
      %25 = vsyncadd [#allocation6], 0
      %s27 = sshll.u32 %s1, 4
      %s28 = int_to_ptr.hbm [resolvable:$true] %s27
      %s29 = sshll.u32 [#allocation5], 4
      %s30 = int_to_ptr.vmem [resolvable:$true] %s29
      %32 = dma.hbm_to_vmem [thread:$0]  %s28, 64, %s30, [#allocation6]
    $region9: #{_word2vec_pallas.1} parent=1 // pred_fallthru
      _
    // Predicated region
    $region10: #{_word2vec_pallas.1} parent=1 // pred_check
      _
    $region11: #{_word2vec_pallas.1} parent=1 // pred_check_branch
      %34 = sbr.rel (0) target = $region13
    $region12: #{_word2vec_pallas.1} parent=1 // pred_region
      %36 = vsyncadd [#allocation6], 0
      %s38 = sshll.u32 %s2, 4
      %s39 = int_to_ptr.hbm [resolvable:$true] %s38
      %s40 = sshll.u32 [#allocation7], 4
      %s41 = int_to_ptr.vmem [resolvable:$true] %s40
      %43 = dma.hbm_to_vmem [thread:$0]  %s39, 64, %s41, [#allocation6]
    $region13: #{_word2vec_pallas.1} parent=1 // pred_fallthru
      _
    // Predicated region
    $region14: #{_word2vec_pallas.1} parent=1 // pred_check
      _
    $region15: #{_word2vec_pallas.1} parent=1 // pred_check_branch
      %45 = sbr.rel (0) target = $region17
    $region16: #{_word2vec_pallas.1} parent=1 // pred_region
      %47 = dma.done [#allocation3], 128
    $region17: #{_word2vec_pallas.1} parent=1 // pred_fallthru
      _
    // Predicated region
    $region18: #{_word2vec_pallas.1} parent=1 // pred_check
      _
    $region19: #{_word2vec_pallas.1} parent=1 // pred_check_branch
      %49 = sbr.rel (0) target = $region21
    $region20: #{_word2vec_pallas.1} parent=1 // pred_region
      %51 = dma.done [#allocation6], 64
    $region21: #{_word2vec_pallas.1} parent=1 // pred_fallthru
      _
    // Predicated region
    $region22: #{_word2vec_pallas.1} parent=1 // pred_check
      _
    $region23: #{_word2vec_pallas.1} parent=1 // pred_check_branch
      %53 = sbr.rel (0) target = $region25
    $region24: #{_word2vec_pallas.1} parent=1 // pred_region
      %55 = dma.done [#allocation6], 64
    $region25: #{_word2vec_pallas.1} parent=1 // pred_fallthru
      _
    %v56 = vld [vmem:[#allocation2] sm:$0xff]
    %v57 = vld [vmem:[#allocation5] sm:$0x1]
    %v58 = vperm.slane %v57, 0
    %v59 = vmul.f32 %v56, %v58
    %60 = vadd.xlane.f32.xlu0 %v59
    %v61 = vpop.xlane.xlu0 %60
    %v62 = vld [vmem:[#allocation7] sm:$0x1]
    %v63 = vperm.slane %v62, 0
    %v64 = vmul.f32 %v61, %v63
    %v65 = vld [vmem:[#allocation5 + $0x1] sm:$0x1]
    %v66 = vperm.slane %v65, 0
    %v67 = vmul.f32 %v56, %v66
    %68 = vadd.xlane.f32.xlu0 %v67
    %v69 = vpop.xlane.xlu0 %68
    %v70 = vld [vmem:[#allocation7 + $0x1] sm:$0x1]
    %v71 = vperm.slane %v70, 0
    %v72 = vmul.f32 %v69, %v71
    %v73 = vadd.f32 %v64, %v72
    %v74 = vld [vmem:[#allocation5 + $0x2] sm:$0x1]
    %v75 = vperm.slane %v74, 0
    %v76 = vmul.f32 %v56, %v75
    %77 = vadd.xlane.f32.xlu0 %v76
    %v78 = vpop.xlane.xlu0 %77
    %v79 = vld [vmem:[#allocation7 + $0x2] sm:$0x1]
    %v80 = vperm.slane %v79, 0
    %v81 = vmul.f32 %v78, %v80
    %v82 = vadd.f32 %v73, %v81
    %83 = vst [vmem:[#allocation8] sm:$0xff] %v82
    // Predicated region
    $region26: #{_word2vec_pallas.1} parent=1 // pred_check
      _
    $region27: #{_word2vec_pallas.1} parent=1 // pred_check_branch
      %85 = sbr.rel (0) target = $region29
    $region28: #{_word2vec_pallas.1} parent=1 // pred_region
      %87 = vsyncadd [#allocation4], 0
      %s89 = sshll.u32 [#allocation8], 4
      %s90 = int_to_ptr.vmem [resolvable:$true] %s89
      %s91 = sshll.u32 %s3, 4
      %s92 = int_to_ptr.hbm [resolvable:$true] %s91
      %94 = dma.vmem_to_hbm [thread:$0]  %s90, 128, %s92, [#allocation4]
    $region29: #{_word2vec_pallas.1} parent=1 // pred_fallthru
      _
    // Predicated region
    $region30: #{_word2vec_pallas.1} parent=1 // pred_check
      _
    $region31: #{_word2vec_pallas.1} parent=1 // pred_check_branch
      %96 = sbr.rel (0) target = $region33
    $region32: #{_word2vec_pallas.1} parent=1 // pred_region
      %98 = dma.done [#allocation4], 128
    $region33: #{_word2vec_pallas.1} parent=1 // pred_fallthru
      _
    %99 = vsyncpa [#allocation3], 1
    %100 = vsyncpa [#allocation6], 1
    %101 = vsyncpa [#allocation4], 1

</llo_original>
